<compile_context>
chip_gen: v7x
topology: tpu7x:2x2x1
jax: 0.10.0
libtpu: 0.0.40
codegen_flags: <defaults>
</compile_context>

<pallas_src>
import jax
import jax.numpy as jnp
from jax.experimental import pallas as pl
from jax.experimental.pallas import tpu as pltpu

LANE = 128


def mlp_kernel(x_ref, w1_ref, b1_ref, w2_ref, b2_ref, o_ref):
    # x_ref:  (3, tb_rows, 128) VMEM f32 -- batch on (sublane, lane)
    # w1_ref: (3, 4) SMEM   b1_ref: (4,) SMEM
    # w2_ref: (4,)   SMEM   b2_ref: (1,) SMEM
    # o_ref:  (tb_rows, 128) VMEM f32
    x0 = x_ref[0]
    x1 = x_ref[1]
    x2 = x_ref[2]

    # y = b2 + sum_j w2[j] * leaky_relu(w1[0,j]*x0 + w1[1,j]*x1 + w1[2,j]*x2 + b1[j])
    acc = b2_ref[0] + jnp.zeros_like(x0)
    for j in range(4):  # unrolled at trace time: 4 hidden units
        h = (w1_ref[0, j] * x0
             + w1_ref[1, j] * x1
             + w1_ref[2, j] * x2
             + b1_ref[j])
        h = jnp.maximum(h, 0.01 * h)  # LeakyReLU, PyTorch default slope
        acc = acc + w2_ref[j] * h
    o_ref[...] = acc.astype(o_ref.dtype)


def mymodel7_2_forward(x, w1, b1, w2, b2, *, tb=128 * 1024):
    """x: (n, 3) -> (n, 1).  tb = batch elements per grid step (default 128K)."""
    n, fin = x.shape
    assert fin == 3

    rows_n = pl.cdiv(n, LANE)          # number of 128-wide batch rows
    padded_n = rows_n * LANE

    # Rows per grid step: multiple of 8 sublanes, or the full row count.
    tb_rows = tb // LANE
    if tb_rows >= rows_n:
        tb_rows = rows_n               # single step; any row count is legal here
    else:
        tb_rows = max(8, (tb_rows // 8) * 8)
    grid = (pl.cdiv(rows_n, tb_rows),)

    # (n, 3) -> (3, n) -> pad batch to a lane multiple (<=127 extra) -> 2-D rows.
    xt = x.T.astype(jnp.float32)
    if padded_n != n:
        xt = jnp.pad(xt, ((0, 0), (0, padded_n - n)))
    xt = xt.reshape(3, rows_n, LANE)

    # Flatten the 21 parameters for SMEM scalar reads.
    w1f = w1.reshape(3, 4).astype(jnp.float32)
    b1f = b1.reshape(4).astype(jnp.float32)
    w2f = w2.reshape(4).astype(jnp.float32)
    b2f = b2.reshape(1).astype(jnp.float32)

    out = pl.pallas_call(
        mlp_kernel,
        out_shape=jax.ShapeDtypeStruct((rows_n, LANE), jnp.float32),
        grid_spec=pltpu.PrefetchScalarGridSpec(
            num_scalar_prefetch=0,
            grid=grid,
            in_specs=[
                pl.BlockSpec((3, tb_rows, LANE), lambda i: (0, i, 0)),  # x slab (VMEM)
                pl.BlockSpec(memory_space=pltpu.MemorySpace.SMEM),      # w1
                pl.BlockSpec(memory_space=pltpu.MemorySpace.SMEM),      # b1
                pl.BlockSpec(memory_space=pltpu.MemorySpace.SMEM),      # w2
                pl.BlockSpec(memory_space=pltpu.MemorySpace.SMEM),      # b2
            ],
            out_specs=pl.BlockSpec((tb_rows, LANE), lambda i: (i, 0)),
        ),
        compiler_params=pltpu.CompilerParams(
            dimension_semantics=("parallel",),
        ),
    )(xt, w1f, b1f, w2f, b2f)

    return out.reshape(padded_n)[:n].reshape(n, 1).astype(x.dtype)


def reference_forward(x, w1, b1, w2, b2):
    h = x @ w1 + b1
    h = jnp.where(h > 0, h, 0.01 * h)
    return h @ w2 + b2


if __name__ == "__main__":
    key = jax.random.PRNGKey(0)
    kx, k1, k2, k3, k4 = jax.random.split(key, 5)

    # PyTorch-style uniform init, bound = 1/sqrt(fan_in).
    bound1 = 1.0 / jnp.sqrt(3.0)
    w1 = jax.random.uniform(k1, (3, 4), jnp.float32, -bound1, bound1)
    b1 = jax.random.uniform(k2, (1, 4), jnp.float32, -bound1, bound1)
    bound2 = 1.0 / jnp.sqrt(4.0)
    w2 = jax.random.uniform(k3, (4, 1), jnp.float32, -bound2, bound2)
    b2 = jax.random.uniform(k4, (1, 1), jnp.float32, -bound2, bound2)

    # Test 1: tiny ragged batch (n=16) with the default big tile (single step,
    # partial lane row).
    n1 = 16
    x1 = jax.random.normal(kx, (n1, 3), dtype=jnp.float32)
    out1 = jax.block_until_ready(mymodel7_2_forward(x1, w1, b1, w2, b2))
    ref1 = reference_forward(x1, w1, b1, w2, b2)
    assert out1.shape == (n1, 1)
    assert jnp.allclose(out1, ref1, atol=1e-5, rtol=1e-5), "mismatch (n=16)"

    # Test 2: multi-step grid with a partial last block (n=2500, tb=1024
    # elements -> 8-row blocks, grid=3, last block covers rows 16..19 of 20).
    n2 = 2500
    x2 = jax.random.normal(jax.random.PRNGKey(1), (n2, 3), dtype=jnp.float32)
    out2 = jax.block_until_ready(mymodel7_2_forward(x2, w1, b1, w2, b2, tb=1024))
    ref2 = reference_forward(x2, w1, b1, w2, b2)
    assert out2.shape == (n2, 1)
    assert jnp.allclose(out2, ref2, atol=1e-5, rtol=1e-5), "mismatch (n=2500)"

    print("KERNEL_OK")
</pallas_src>

<mosaic_0001>
module attributes {stable_mosaic.version = 11 : i64} {
  func.func @mlp_kernel(%arg0: i32, %arg1: memref<3x1x128xf32, #tpu.memory_space<vmem>>, %arg2: memref<3x4xf32, #tpu.memory_space<smem>>, %arg3: memref<4xf32, #tpu.memory_space<smem>>, %arg4: memref<4xf32, #tpu.memory_space<smem>>, %arg5: memref<1xf32, #tpu.memory_space<smem>>, %arg6: memref<1x128xf32, #tpu.memory_space<vmem>>) attributes {dimension_semantics = [#tpu.dimension_semantics<parallel>], iteration_bounds = array<i64: 1>, scalar_prefetch = 0 : i64, scratch_operands = 0 : i64, tpu.core_type = #tpu.core_type<tc>, window_params = [{transform_indices = @transform_0, window_bounds = array<i64: 3, 1, 128>}, {transform_indices = @transform_1, window_bounds = array<i64: 3, 4>}, {transform_indices = @transform_2, window_bounds = array<i64: 4>}, {transform_indices = @transform_3, window_bounds = array<i64: 4>}, {transform_indices = @transform_4, window_bounds = array<i64: 1>}, {transform_indices = @transform_5, window_bounds = array<i64: 1, 128>}]} {
    %c0 = arith.constant 0 : index
    %c0_0 = arith.constant 0 : index
    %c0_1 = arith.constant 0 : index
    %0 = vector.load %arg1[%c0, %c0_0, %c0_1] : memref<3x1x128xf32, #tpu.memory_space<vmem>>, vector<1x1x128xf32>
    %1 = vector.shape_cast %0 : vector<1x1x128xf32> to vector<1x128xf32>
    %c1 = arith.constant 1 : index
    %c0_2 = arith.constant 0 : index
    %c0_3 = arith.constant 0 : index
    %2 = vector.load %arg1[%c1, %c0_2, %c0_3] : memref<3x1x128xf32, #tpu.memory_space<vmem>>, vector<1x1x128xf32>
    %3 = vector.shape_cast %2 : vector<1x1x128xf32> to vector<1x128xf32>
    %c2 = arith.constant 2 : index
    %c0_4 = arith.constant 0 : index
    %c0_5 = arith.constant 0 : index
    %4 = vector.load %arg1[%c2, %c0_4, %c0_5] : memref<3x1x128xf32, #tpu.memory_space<vmem>>, vector<1x1x128xf32>
    %5 = vector.shape_cast %4 : vector<1x1x128xf32> to vector<1x128xf32>
    %c0_6 = arith.constant 0 : index
    %6 = memref.load %arg5[%c0_6] : memref<1xf32, #tpu.memory_space<smem>>
    %cst = arith.constant 0.000000e+00 : f32
    %7 = vector.broadcast %cst : f32 to vector<1x128xf32>
    %8 = vector.broadcast %6 : f32 to vector<1x128xf32>
    %9 = arith.addf %8, %7 : vector<1x128xf32>
    %c0_7 = arith.constant 0 : index
    %c0_8 = arith.constant 0 : index
    %10 = memref.load %arg2[%c0_7, %c0_8] : memref<3x4xf32, #tpu.memory_space<smem>>
    %11 = vector.broadcast %10 : f32 to vector<1x128xf32>
    %12 = arith.mulf %11, %1 : vector<1x128xf32>
    %c1_9 = arith.constant 1 : index
    %c0_10 = arith.constant 0 : index
    %13 = memref.load %arg2[%c1_9, %c0_10] : memref<3x4xf32, #tpu.memory_space<smem>>
    %14 = vector.broadcast %13 : f32 to vector<1x128xf32>
    %15 = arith.mulf %14, %3 : vector<1x128xf32>
    %16 = arith.addf %12, %15 : vector<1x128xf32>
    %c2_11 = arith.constant 2 : index
    %c0_12 = arith.constant 0 : index
    %17 = memref.load %arg2[%c2_11, %c0_12] : memref<3x4xf32, #tpu.memory_space<smem>>
    %18 = vector.broadcast %17 : f32 to vector<1x128xf32>
    %19 = arith.mulf %18, %5 : vector<1x128xf32>
    %20 = arith.addf %16, %19 : vector<1x128xf32>
    %c0_13 = arith.constant 0 : index
    %21 = memref.load %arg3[%c0_13] : memref<4xf32, #tpu.memory_space<smem>>
    %22 = vector.broadcast %21 : f32 to vector<1x128xf32>
    %23 = arith.addf %20, %22 : vector<1x128xf32>
    %cst_14 = arith.constant 0.00999999977 : f32
    %24 = vector.broadcast %cst_14 : f32 to vector<1x128xf32>
    %25 = arith.mulf %24, %23 : vector<1x128xf32>
    %26 = arith.maximumf %23, %25 : vector<1x128xf32>
    %c0_15 = arith.constant 0 : index
    %27 = memref.load %arg4[%c0_15] : memref<4xf32, #tpu.memory_space<smem>>
    %28 = vector.broadcast %27 : f32 to vector<1x128xf32>
    %29 = arith.mulf %28, %26 : vector<1x128xf32>
    %30 = arith.addf %9, %29 : vector<1x128xf32>
    %c0_16 = arith.constant 0 : index
    %c1_17 = arith.constant 1 : index
    %31 = memref.load %arg2[%c0_16, %c1_17] : memref<3x4xf32, #tpu.memory_space<smem>>
    %32 = vector.broadcast %31 : f32 to vector<1x128xf32>
    %33 = arith.mulf %32, %1 : vector<1x128xf32>
    %c1_18 = arith.constant 1 : index
    %c1_19 = arith.constant 1 : index
    %34 = memref.load %arg2[%c1_18, %c1_19] : memref<3x4xf32, #tpu.memory_space<smem>>
    %35 = vector.broadcast %34 : f32 to vector<1x128xf32>
    %36 = arith.mulf %35, %3 : vector<1x128xf32>
    %37 = arith.addf %33, %36 : vector<1x128xf32>
    %c2_20 = arith.constant 2 : index
    %c1_21 = arith.constant 1 : index
    %38 = memref.load %arg2[%c2_20, %c1_21] : memref<3x4xf32, #tpu.memory_space<smem>>
    %39 = vector.broadcast %38 : f32 to vector<1x128xf32>
    %40 = arith.mulf %39, %5 : vector<1x128xf32>
    %41 = arith.addf %37, %40 : vector<1x128xf32>
    %c1_22 = arith.constant 1 : index
    %42 = memref.load %arg3[%c1_22] : memref<4xf32, #tpu.memory_space<smem>>
    %43 = vector.broadcast %42 : f32 to vector<1x128xf32>
    %44 = arith.addf %41, %43 : vector<1x128xf32>
    %cst_23 = arith.constant 0.00999999977 : f32
    %45 = vector.broadcast %cst_23 : f32 to vector<1x128xf32>
    %46 = arith.mulf %45, %44 : vector<1x128xf32>
    %47 = arith.maximumf %44, %46 : vector<1x128xf32>
    %c1_24 = arith.constant 1 : index
    %48 = memref.load %arg4[%c1_24] : memref<4xf32, #tpu.memory_space<smem>>
    %49 = vector.broadcast %48 : f32 to vector<1x128xf32>
    %50 = arith.mulf %49, %47 : vector<1x128xf32>
    %51 = arith.addf %30, %50 : vector<1x128xf32>
    %c0_25 = arith.constant 0 : index
    %c2_26 = arith.constant 2 : index
    %52 = memref.load %arg2[%c0_25, %c2_26] : memref<3x4xf32, #tpu.memory_space<smem>>
    %53 = vector.broadcast %52 : f32 to vector<1x128xf32>
    %54 = arith.mulf %53, %1 : vector<1x128xf32>
    %c1_27 = arith.constant 1 : index
    %c2_28 = arith.constant 2 : index
    %55 = memref.load %arg2[%c1_27, %c2_28] : memref<3x4xf32, #tpu.memory_space<smem>>
    %56 = vector.broadcast %55 : f32 to vector<1x128xf32>
    %57 = arith.mulf %56, %3 : vector<1x128xf32>
    %58 = arith.addf %54, %57 : vector<1x128xf32>
    %c2_29 = arith.constant 2 : index
    %c2_30 = arith.constant 2 : index
    %59 = memref.load %arg2[%c2_29, %c2_30] : memref<3x4xf32, #tpu.memory_space<smem>>
    %60 = vector.broadcast %59 : f32 to vector<1x128xf32>
    %61 = arith.mulf %60, %5 : vector<1x128xf32>
    %62 = arith.addf %58, %61 : vector<1x128xf32>
    %c2_31 = arith.constant 2 : index
    %63 = memref.load %arg3[%c2_31] : memref<4xf32, #tpu.memory_space<smem>>
    %64 = vector.broadcast %63 : f32 to vector<1x128xf32>
    %65 = arith.addf %62, %64 : vector<1x128xf32>
    %cst_32 = arith.constant 0.00999999977 : f32
    %66 = vector.broadcast %cst_32 : f32 to vector<1x128xf32>
    %67 = arith.mulf %66, %65 : vector<1x128xf32>
    %68 = arith.maximumf %65, %67 : vector<1x128xf32>
    %c2_33 = arith.constant 2 : index
    %69 = memref.load %arg4[%c2_33] : memref<4xf32, #tpu.memory_space<smem>>
    %70 = vector.broadcast %69 : f32 to vector<1x128xf32>
    %71 = arith.mulf %70, %68 : vector<1x128xf32>
    %72 = arith.addf %51, %71 : vector<1x128xf32>
    %c0_34 = arith.constant 0 : index
    %c3 = arith.constant 3 : index
    %73 = memref.load %arg2[%c0_34, %c3] : memref<3x4xf32, #tpu.memory_space<smem>>
    %74 = vector.broadcast %73 : f32 to vector<1x128xf32>
    %75 = arith.mulf %74, %1 : vector<1x128xf32>
    %c1_35 = arith.constant 1 : index
    %c3_36 = arith.constant 3 : index
    %76 = memref.load %arg2[%c1_35, %c3_36] : memref<3x4xf32, #tpu.memory_space<smem>>
    %77 = vector.broadcast %76 : f32 to vector<1x128xf32>
    %78 = arith.mulf %77, %3 : vector<1x128xf32>
    %79 = arith.addf %75, %78 : vector<1x128xf32>
    %c2_37 = arith.constant 2 : index
    %c3_38 = arith.constant 3 : index
    %80 = memref.load %arg2[%c2_37, %c3_38] : memref<3x4xf32, #tpu.memory_space<smem>>
    %81 = vector.broadcast %80 : f32 to vector<1x128xf32>
    %82 = arith.mulf %81, %5 : vector<1x128xf32>
    %83 = arith.addf %79, %82 : vector<1x128xf32>
    %c3_39 = arith.constant 3 : index
    %84 = memref.load %arg3[%c3_39] : memref<4xf32, #tpu.memory_space<smem>>
    %85 = vector.broadcast %84 : f32 to vector<1x128xf32>
    %86 = arith.addf %83, %85 : vector<1x128xf32>
    %cst_40 = arith.constant 0.00999999977 : f32
    %87 = vector.broadcast %cst_40 : f32 to vector<1x128xf32>
    %88 = arith.mulf %87, %86 : vector<1x128xf32>
    %89 = arith.maximumf %86, %88 : vector<1x128xf32>
    %c3_41 = arith.constant 3 : index
    %90 = memref.load %arg4[%c3_41] : memref<4xf32, #tpu.memory_space<smem>>
    %91 = vector.broadcast %90 : f32 to vector<1x128xf32>
    %92 = arith.mulf %91, %89 : vector<1x128xf32>
    %93 = arith.addf %72, %92 : vector<1x128xf32>
    %c0_42 = arith.constant 0 : index
    %c0_43 = arith.constant 0 : index
    %94 = vector.load %arg6[%c0_42, %c0_43] : memref<1x128xf32, #tpu.memory_space<vmem>>, vector<1x128xf32>
    tpu.vector_store %arg6[%c0_42, %c0_43], %93 {strides = array<i32>} : memref<1x128xf32, #tpu.memory_space<vmem>>, vector<1x128xf32>,
    return
  }
  func.func @transform_0(%arg0: i32) -> (i32, i32, i32) {
    %c0_i32 = arith.constant 0 : i32
    %c0_i32_0 = arith.constant 0 : i32
    %c0_i32_1 = arith.constant 0 : i32
    return %c0_i32, %arg0, %c0_i32_0 : i32, i32, i32
  }
  func.func @transform_1(%arg0: i32) -> (i32, i32) {
    %c0_i32 = arith.constant 0 : i32
    %c0_i32_0 = arith.constant 0 : i32
    %c0_i32_1 = arith.constant 0 : i32
    return %c0_i32, %c0_i32_0 : i32, i32
  }
  func.func @transform_2(%arg0: i32) -> i32 {
    %c0_i32 = arith.constant 0 : i32
    %c0_i32_0 = arith.constant 0 : i32
    return %c0_i32 : i32
  }
  func.func @transform_3(%arg0: i32) -> i32 {
    %c0_i32 = arith.constant 0 : i32
    %c0_i32_0 = arith.constant 0 : i32
    return %c0_i32 : i32
  }
  func.func @transform_4(%arg0: i32) -> i32 {
    %c0_i32 = arith.constant 0 : i32
    %c0_i32_0 = arith.constant 0 : i32
    return %c0_i32 : i32
  }
  func.func @transform_5(%arg0: i32) -> (i32, i32) {
    %c0_i32 = arith.constant 0 : i32
    %c0_i32_0 = arith.constant 0 : i32
    return %arg0, %c0_i32 : i32, i32
  }
}

</mosaic_0001>

<llo_original>
// kernel: tpu_custom_call.1
$region0: #{tpu_custom_call.1}
  #allocation0 [shape = 'u32[]', space=smem, size = 0x4, offset = 0x4, fixed_abs, tag = 'smem constant byte address 0x4 - core index']
  #allocation1 [shape = 'u32[144,128]{1,0:T(1,128)}', space=vmem, size = 0x12000, scoped, tag = 'internal scratch']
  #allocation2 [shape = 'f32[1]{0:T(128)S(6)}', space=smem, size = 0x200, scoped, tag = 'scoped memory for tpu_custom_call.1']
  %s0 = inlined_call_operand.vmem [shape: f32[3,1,128], index: 0, kind: input, shape index: {}]
  %s1 = inlined_call_operand.vmem [shape: f32[3,4], index: 1, kind: input, shape index: {}]
  %s2 = inlined_call_operand.vmem [shape: f32[4], index: 2, kind: input, shape index: {}]
  %s3 = inlined_call_operand.vmem [shape: f32[4], index: 3, kind: input, shape index: {}]
  %s4 = inlined_call_operand.<no memory space> [shape: f32[1], index: 4, kind: input, shape index: {}]
  %s5 = inlined_call_operand.hbm [shape: f32[1,128], index: 5, kind: output, shape index: {}]
  %s6 = sld [smem:[#allocation0]]
  $region42: #{tpu_custom_call.1} parent=0
    _
  %s8 = ssub.s32 1, %s6
  %s9 = scalar_select 0, %s8, %s6
  %10 = sst [smem:[#allocation2]] %s4
  $region1: #{tpu_custom_call.1} parent=0
    #allocation3 [shape = 'u8[2048]{0}', space=smem, size = 0x800, scoped, tag = 'input window, operand 1, single buffered']
    #allocation4 [shape = 's32[1]{0}', space=sflag, size = 0x4, scoped, tag = 'scoped memory for tpu_custom_call.1']
    #allocation5 [shape = 's32[1]{0}', space=sflag, size = 0x4, scoped, tag = 'scoped memory for tpu_custom_call.1']
    #allocation6 [shape = 'u8[512]{0}', space=smem, size = 0x200, scoped, tag = 'input window, operand 2, single buffered']
    #allocation7 [shape = 's32[1]{0}', space=sflag, size = 0x4, scoped, tag = 'scoped memory for tpu_custom_call.1']
    #allocation8 [shape = 'u8[512]{0}', space=smem, size = 0x200, scoped, tag = 'input window, operand 3, single buffered']
    #allocation9 [shape = 'u8[512]{0}', space=vmem, size = 0x400, scoped, tag = 'output window, operand 0, single buffered']
    %11 = vsyncpa [#allocation5], 0
    %12 = vsyncpa [#allocation7], 0
    %13 = vsyncpa [#allocation4], 0
    // Predicated region
    $region2: #{tpu_custom_call.1} parent=1 // pred_check
      _
    $region3: #{tpu_custom_call.1} parent=1 // pred_check_branch
      %15 = sbr.rel (0) target = $region5
    $region4: #{tpu_custom_call.1} parent=1 // pred_region
      _
    $region5: #{tpu_custom_call.1} parent=1 // pred_fallthru
      _
    // Predicated region
    $region6: #{tpu_custom_call.1} parent=1 // pred_check
      _
    $region7: #{tpu_custom_call.1} parent=1 // pred_check_branch
      %17 = sbr.rel (0) target = $region9
    $region8: #{tpu_custom_call.1} parent=1 // pred_region
      %s19 = ssub.s32 64, 64
      %20 = vsyncadd [#allocation5], %s19
      %s22 = sshll.u32 %s1, 4
      %s23 = int_to_ptr.vmem [resolvable:$true] %s22
      %25 = dma.vmem_to_smem %s23, 64, [#allocation3], [#allocation5]
    $region9: #{tpu_custom_call.1} parent=1 // pred_fallthru
      _
    // Predicated region
    $region10: #{tpu_custom_call.1} parent=1 // pred_check
      _
    $region11: #{tpu_custom_call.1} parent=1 // pred_check_branch
      %27 = sbr.rel (0) target = $region13
    $region12: #{tpu_custom_call.1} parent=1 // pred_region
      %s29 = ssub.s32 16, 16
      %30 = vsyncadd [#allocation7], %s29
      %s32 = sshll.u32 %s2, 4
      %s33 = int_to_ptr.vmem [resolvable:$true] %s32
      %35 = dma.vmem_to_smem %s33, 16, [#allocation6], [#allocation7]
    $region13: #{tpu_custom_call.1} parent=1 // pred_fallthru
      _
    // Predicated region
    $region14: #{tpu_custom_call.1} parent=1 // pred_check
      _
    $region15: #{tpu_custom_call.1} parent=1 // pred_check_branch
      %37 = sbr.rel (0) target = $region17
    $region16: #{tpu_custom_call.1} parent=1 // pred_region
      %s39 = ssub.s32 16, 16
      %40 = vsyncadd [#allocation7], %s39
      %s42 = sshll.u32 %s3, 4
      %s43 = int_to_ptr.vmem [resolvable:$true] %s42
      %45 = dma.vmem_to_smem %s43, 16, [#allocation8], [#allocation7]
    $region17: #{tpu_custom_call.1} parent=1 // pred_fallthru
      _
    // Predicated region
    $region18: #{tpu_custom_call.1} parent=1 // pred_check
      _
    $region19: #{tpu_custom_call.1} parent=1 // pred_check_branch
      %47 = sbr.rel (0) target = $region21
    $region20: #{tpu_custom_call.1} parent=1 // pred_region
      _
    $region21: #{tpu_custom_call.1} parent=1 // pred_fallthru
      _
    // Predicated region
    $region22: #{tpu_custom_call.1} parent=1 // pred_check
      _
    $region23: #{tpu_custom_call.1} parent=1 // pred_check_branch
      %49 = sbr.rel (0) target = $region25
    $region24: #{tpu_custom_call.1} parent=1 // pred_region
      %50 = dma.done [#allocation5], 64
    $region25: #{tpu_custom_call.1} parent=1 // pred_fallthru
      _
    // Predicated region
    $region26: #{tpu_custom_call.1} parent=1 // pred_check
      _
    $region27: #{tpu_custom_call.1} parent=1 // pred_check_branch
      %52 = sbr.rel (0) target = $region29
    $region28: #{tpu_custom_call.1} parent=1 // pred_region
      %53 = dma.done [#allocation7], 16
    $region29: #{tpu_custom_call.1} parent=1 // pred_fallthru
      _
    // Predicated region
    $region30: #{tpu_custom_call.1} parent=1 // pred_check
      _
    $region31: #{tpu_custom_call.1} parent=1 // pred_check_branch
      %55 = sbr.rel (0) target = $region33
    $region32: #{tpu_custom_call.1} parent=1 // pred_region
      %56 = dma.done [#allocation7], 16
    $region33: #{tpu_custom_call.1} parent=1 // pred_fallthru
      _
    %57 = sfence
    %v58 = vld [vmem:[%s0] sm:$0x1]
    %s59 = scalar_lea.vmem %s0, 1
    %v60 = vld [vmem:[%s59] sm:$0x1]
    %s61 = scalar_lea.vmem %s0, 2
    %v62 = vld [vmem:[%s61] sm:$0x1]
    %s63 = sld [smem:[#allocation2]]
    %v64 = vstv %s63
    %v65 = vadd.f32 %v64, 0.0
    %s66 = sld [smem:[#allocation3]]
    %v67 = vstv %s66
    %v68 = vmul.f32 %v67, %v58
    %s69 = sld [smem:[#allocation3 + $0x80]]
    %v70 = vstv %s69
    %v71 = vmul.f32 %v70, %v60
    %v72 = vadd.f32 %v68, %v71
    %s73 = sld [smem:[#allocation3 + $0x100]]
    %v74 = vstv %s73
    %v75 = vmul.f32 %v74, %v62
    %v76 = vadd.f32 %v72, %v75
    %s77 = sld [smem:[#allocation6]]
    %v78 = vstv %s77
    %v79 = vadd.f32 %v76, %v78
    %v80 = vmul.f32 %v79, 0.01
    %v81 = vmax.f32 %v79, %v80
    %s82 = sld [smem:[#allocation8]]
    %v83 = vstv %s82
    %v84 = vmul.f32 %v83, %v81
    %v85 = vadd.f32 %v65, %v84
    %s86 = sld [smem:[#allocation3 + $0x1]]
    %v87 = vstv %s86
    %v88 = vmul.f32 %v87, %v58
    %s89 = sld [smem:[#allocation3 + $0x81]]
    %v90 = vstv %s89
    %v91 = vmul.f32 %v90, %v60
    %v92 = vadd.f32 %v88, %v91
    %s93 = sld [smem:[#allocation3 + $0x101]]
    %v94 = vstv %s93
    %v95 = vmul.f32 %v94, %v62
    %v96 = vadd.f32 %v92, %v95
    %s97 = sld [smem:[#allocation6 + $0x1]]
    %v98 = vstv %s97
    %v99 = vadd.f32 %v96, %v98
    %v100 = vmul.f32 %v99, 0.01
    %v101 = vmax.f32 %v99, %v100
    %s102 = sld [smem:[#allocation8 + $0x1]]
    %v103 = vstv %s102
    %v104 = vmul.f32 %v103, %v101
    %v105 = vadd.f32 %v85, %v104
    %s106 = sld [smem:[#allocation3 + $0x2]]
    %v107 = vstv %s106
    %v108 = vmul.f32 %v107, %v58
    %s109 = sld [smem:[#allocation3 + $0x82]]
    %v110 = vstv %s109
    %v111 = vmul.f32 %v110, %v60
    %v112 = vadd.f32 %v108, %v111
    %s113 = sld [smem:[#allocation3 + $0x102]]
    %v114 = vstv %s113
    %v115 = vmul.f32 %v114, %v62
    %v116 = vadd.f32 %v112, %v115
    %s117 = sld [smem:[#allocation6 + $0x2]]
    %v118 = vstv %s117
    %v119 = vadd.f32 %v116, %v118
    %v120 = vmul.f32 %v119, 0.01
    %v121 = vmax.f32 %v119, %v120
    %s122 = sld [smem:[#allocation8 + $0x2]]
    %v123 = vstv %s122
    %v124 = vmul.f32 %v123, %v121
    %v125 = vadd.f32 %v105, %v124
    %s126 = sld [smem:[#allocation3 + $0x3]]
    %v127 = vstv %s126
    %v128 = vmul.f32 %v127, %v58
    %s129 = sld [smem:[#allocation3 + $0x83]]
    %v130 = vstv %s129
    %v131 = vmul.f32 %v130, %v60
    %v132 = vadd.f32 %v128, %v131
    %s133 = sld [smem:[#allocation3 + $0x103]]
    %v134 = vstv %s133
    %v135 = vmul.f32 %v134, %v62
    %v136 = vadd.f32 %v132, %v135
    %s137 = sld [smem:[#allocation6 + $0x3]]
    %v138 = vstv %s137
    %v139 = vadd.f32 %v136, %v138
    %v140 = vmul.f32 %v139, 0.01
    %v141 = vmax.f32 %v139, %v140
    %s142 = sld [smem:[#allocation8 + $0x3]]
    %v143 = vstv %s142
    %v144 = vmul.f32 %v143, %v141
    %v145 = vadd.f32 %v125, %v144
    %146 = vst [vmem:[#allocation9] sm:$0x1] %v145
    // Predicated region
    $region34: #{tpu_custom_call.1} parent=1 // pred_check
      _
    $region35: #{tpu_custom_call.1} parent=1 // pred_check_branch
      %148 = sbr.rel (0) target = $region37
    $region36: #{tpu_custom_call.1} parent=1 // pred_region
      %s150 = ssub.s32 16, 16
      %151 = vsyncadd [#allocation4], %s150
      %s153 = sshll.u32 [#allocation9], 4
      %s154 = int_to_ptr.vmem [resolvable:$true] %s153
      %156 = dma.vmem_to_hbm [thread:$0]  %s154, 16, %s5, [#allocation4]
    $region37: #{tpu_custom_call.1} parent=1 // pred_fallthru
      _
    // Predicated region
    $region38: #{tpu_custom_call.1} parent=1 // pred_check
      _
    $region39: #{tpu_custom_call.1} parent=1 // pred_check_branch
      %158 = sbr.rel (0) target = $region41
    $region40: #{tpu_custom_call.1} parent=1 // pred_region
      %159 = dma.done [#allocation4], 16
    $region41: #{tpu_custom_call.1} parent=1 // pred_fallthru
      _
    %160 = vsyncpa [#allocation4], 1
    %161 = vsyncpa [#allocation5], 1
    %162 = vsyncpa [#allocation7], 1

</llo_original>
